<compile_context>
chip_gen: v5e
topology: v5e:2x2
jax: 0.10.0
libtpu: 0.0.40
codegen_flags: <defaults>
</compile_context>

<pallas_src>
import jax
import jax.numpy as jnp
from jax.experimental import pallas as pl
from jax.experimental.pallas import tpu as pltpu


def _round_up(x, m):
    return ((x + m - 1) // m) * m


def _linear_kernel(x_ref, w_ref, b_ref, o_ref):
    # Single-tile matmul on the MXU with f32 accumulation + f32 bias add on the VPU.
    acc = jnp.dot(x_ref[...], w_ref[...], preferred_element_type=jnp.float32)
    o_ref[...] = (acc + b_ref[...]).astype(o_ref.dtype)


def pose_final_linear(x2d, w_pad, b_pad, *, tm=512):
    """x2d: (M, K), w_pad: (K, N_pad), b_pad: (1, N_pad) -> (M, N_pad).

    N_pad must be a multiple of 128 (caller pads weight/bias with zeros).
    M is padded internally to a multiple of the M tile and sliced back.
    """
    M, K = x2d.shape
    Kw, N_pad = w_pad.shape
    assert Kw == K
    assert N_pad % 128 == 0

    # Pick an MXU/VMEM friendly M tile; shrink it for small inputs so we don't
    # pad tiny problems up to 512 rows.
    tm_eff = min(tm, _round_up(M, 8))
    M_pad = _round_up(M, tm_eff)
    if M_pad != M:
        x2d = jnp.pad(x2d, ((0, M_pad - M), (0, 0)))

    grid = (M_pad // tm_eff,)

    cost = pl.CostEstimate(
        flops=2 * M_pad * K * N_pad,
        bytes_accessed=4 * (M_pad * K + K * N_pad + M_pad * N_pad),
        transcendentals=0,
    )

    y = pl.pallas_call(
        _linear_kernel,
        out_shape=jax.ShapeDtypeStruct((M_pad, N_pad), x2d.dtype),
        grid=grid,
        in_specs=[
            pl.BlockSpec((tm_eff, K), lambda i: (i, 0)),   # x tile, pipelined over M
            pl.BlockSpec((K, N_pad), lambda i: (0, 0)),    # weight, resident
            pl.BlockSpec((1, N_pad), lambda i: (0, 0)),    # bias, resident
        ],
        out_specs=pl.BlockSpec((tm_eff, N_pad), lambda i: (i, 0)),
        compiler_params=pltpu.CompilerParams(
            dimension_semantics=("parallel",),
        ),
        cost_estimate=cost,
    )(x2d, w_pad, b_pad)

    return y[:M]


class OutputProcessPallas:
    """JAX/Pallas equivalent of the PyTorch OutputProcess module."""

    def __init__(self, input_feats, latent_dim, njoints, nfeats, key):
        assert input_feats == njoints * nfeats
        self.input_feats = input_feats
        self.latent_dim = latent_dim
        self.njoints = njoints
        self.nfeats = nfeats

        k_w, k_b = jax.random.split(key)
        # Deterministic init mimicking nn.Linear default (uniform in +/- 1/sqrt(in)).
        bound = 1.0 / (latent_dim ** 0.5)
        # PyTorch stores weight as (out, in); keep that convention for reference math.
        self.weight = jax.random.uniform(
            k_w, (input_feats, latent_dim), jnp.float32, -bound, bound
        )
        self.bias = jax.random.uniform(
            k_b, (input_feats,), jnp.float32, -bound, bound
        )

        # Pre-transpose and pre-pad once at init so the per-call path does no
        # extra HBM work: weight -> (latent_dim, N_pad), bias -> (1, N_pad),
        # with zero-filled padding columns (they never leak: output is sliced).
        n_pad = _round_up(input_feats, 128)
        self.n_pad = n_pad
        w_t = self.weight.T                                    # (latent_dim, input_feats)
        self.w_t_pad = jnp.pad(w_t, ((0, 0), (0, n_pad - input_feats)))
        self.b_pad = jnp.pad(
            self.bias.reshape(1, -1), ((0, 0), (0, n_pad - input_feats))
        )

    def __call__(self, output):
        # output: (nframes, bs, latent_dim)
        nframes, bs, d = output.shape
        x2d = output.reshape(nframes * bs, d)
        y2d = pose_final_linear(x2d, self.w_t_pad, self.b_pad)  # (M, N_pad)
        y2d = y2d[:, : self.input_feats]                        # drop zero-padded cols
        y = y2d.reshape(nframes, bs, self.njoints, self.nfeats)
        # TODO(synk): the final permute is a full extra HBM pass; drop it if the
        # consumer can take frames-major (nframes, bs, njoints, nfeats) directly.
        return jnp.transpose(y, (1, 2, 3, 0))  # (bs, njoints, nfeats, nframes)


if __name__ == "__main__":
    key = jax.random.PRNGKey(0)
    k_param, k_x = jax.random.split(key)

    # Small shapes consistent with the module.
    nframes, bs = 8, 2
    latent_dim = 32
    njoints, nfeats = 4, 3
    input_feats = njoints * nfeats

    mod = OutputProcessPallas(input_feats, latent_dim, njoints, nfeats, k_param)
    x = jax.random.normal(k_x, (nframes, bs, latent_dim), jnp.float32)

    out = mod(x)
    out = jax.block_until_ready(out)

    # Sanity checks against a pure-JAX reference of the same forward.
    ref = (x.reshape(-1, latent_dim) @ mod.weight.T + mod.bias).reshape(
        nframes, bs, njoints, nfeats
    ).transpose(1, 2, 3, 0)
    assert out.shape == (bs, njoints, nfeats, nframes)
    assert jnp.allclose(out, ref, atol=1e-5, rtol=1e-5)

    print("KERNEL_OK")
</pallas_src>

<mosaic_0001>
module attributes {stable_mosaic.version = 11 : i64} {
  func.func @_linear_kernel(%arg0: i32, %arg1: memref<16x32xf32, #tpu.memory_space<vmem>>, %arg2: memref<32x128xf32, #tpu.memory_space<vmem>>, %arg3: memref<1x128xf32, #tpu.memory_space<vmem>>, %arg4: memref<16x128xf32, #tpu.memory_space<vmem>>) attributes {dimension_semantics = [#tpu.dimension_semantics<parallel>], iteration_bounds = array<i64: 1>, scalar_prefetch = 0 : i64, scratch_operands = 0 : i64, tpu.core_type = #tpu.core_type<tc>, window_params = [{transform_indices = @transform_0, window_bounds = array<i64: 16, 32>}, {pipeline_mode = #tpu.pipeline_mode<synchronous>, transform_indices = @transform_1, window_bounds = array<i64: 32, 128>}, {pipeline_mode = #tpu.pipeline_mode<synchronous>, transform_indices = @transform_2, window_bounds = array<i64: 1, 128>}, {transform_indices = @transform_3, window_bounds = array<i64: 16, 128>}]} {
    %c0 = arith.constant 0 : index
    %c0_0 = arith.constant 0 : index
    %0 = vector.load %arg1[%c0, %c0_0] : memref<16x32xf32, #tpu.memory_space<vmem>>, vector<16x32xf32>
    %c0_1 = arith.constant 0 : index
    %c0_2 = arith.constant 0 : index
    %1 = vector.load %arg2[%c0_1, %c0_2] : memref<32x128xf32, #tpu.memory_space<vmem>>, vector<32x128xf32>
    %cst = arith.constant dense<0.000000e+00> : vector<16x128xf32>
    %2 = tpu.matmul %0, %1, %cst {dimension_numbers = #tpu.dot_dimension_numbers<[1], [0], [0], [1], [0, 0, 1, 1], [], []>} : vector<16x32xf32>, vector<32x128xf32>, vector<16x128xf32> -> vector<16x128xf32>
    %c0_3 = arith.constant 0 : index
    %c0_4 = arith.constant 0 : index
    %3 = vector.load %arg3[%c0_3, %c0_4] : memref<1x128xf32, #tpu.memory_space<vmem>>, vector<1x128xf32>
    %4 = vector.broadcast %3 : vector<1x128xf32> to vector<16x128xf32>
    %5 = arith.addf %2, %4 : vector<16x128xf32>
    %c0_5 = arith.constant 0 : index
    %c0_6 = arith.constant 0 : index
    %6 = vector.load %arg4[%c0_5, %c0_6] : memref<16x128xf32, #tpu.memory_space<vmem>>, vector<16x128xf32>
    tpu.vector_store %arg4[%c0_5, %c0_6], %5 {strides = array<i32>} : memref<16x128xf32, #tpu.memory_space<vmem>>, vector<16x128xf32>,
    return
  }
  func.func @transform_0(%arg0: i32) -> (i32, i32) {
    %c0_i32 = arith.constant 0 : i32
    %c0_i32_0 = arith.constant 0 : i32
    return %arg0, %c0_i32 : i32, i32
  }
  func.func @transform_1(%arg0: i32) -> (i32, i32) {
    %c0_i32 = arith.constant 0 : i32
    %c0_i32_0 = arith.constant 0 : i32
    %c0_i32_1 = arith.constant 0 : i32
    return %c0_i32, %c0_i32_0 : i32, i32
  }
  func.func @transform_2(%arg0: i32) -> (i32, i32) {
    %c0_i32 = arith.constant 0 : i32
    %c0_i32_0 = arith.constant 0 : i32
    %c0_i32_1 = arith.constant 0 : i32
    return %c0_i32, %c0_i32_0 : i32, i32
  }
  func.func @transform_3(%arg0: i32) -> (i32, i32) {
    %c0_i32 = arith.constant 0 : i32
    %c0_i32_0 = arith.constant 0 : i32
    return %arg0, %c0_i32 : i32, i32
  }
}

</mosaic_0001>

<llo_original>
// kernel: tpu_custom_call.1
$region0: #{tpu_custom_call.1}
  #allocation0 [shape = 'u32[]', space=smem, size = 0x4, offset = 0x4, fixed_abs, tag = 'smem constant byte address 0x4 - core index']
  #allocation1 [shape = 'u32[72,128]{1,0:T(1,128)}', space=vmem, size = 0x9000, scoped, tag = 'internal scratch']
  %s0 = inlined_call_operand.hbm [shape: f32[16,32], index: 0, kind: input, shape index: {}]
  %s1 = inlined_call_operand.hbm [shape: f32[32,128], index: 1, kind: input, shape index: {}]
  %s2 = inlined_call_operand.vmem [shape: f32[1,128], index: 2, kind: input, shape index: {}]
  %s3 = inlined_call_operand.hbm [shape: f32[16,128], index: 3, kind: output, shape index: {}]
  %s4 = sld [smem:[#allocation0]]
  $region30: #{tpu_custom_call.1} parent=0
    _
  %s6 = ssub.s32 1, %s4
  %s7 = scalar_select 0, %s6, %s4
  $region1: #{tpu_custom_call.1} parent=0
    #allocation2 [shape = 'u8[8192]{0}', space=vmem, size = 0x2000, scoped, tag = 'input window, operand 0, single buffered']
    #allocation3 [shape = 's32[1]{0}', space=sflag, size = 0x4, scoped, tag = 'scoped memory for tpu_custom_call.1']
    #allocation4 [shape = 's32[1]{0}', space=sflag, size = 0x4, scoped, tag = 'scoped memory for tpu_custom_call.1']
    #allocation5 [shape = 'u8[16384]{0}', space=vmem, size = 0x4000, scoped, tag = 'input window, operand 1, single buffered']
    #allocation6 [shape = 's32[1]{0}', space=sflag, size = 0x4, scoped, tag = 'scoped memory for tpu_custom_call.1']
    #allocation7 [shape = 'u8[8192]{0}', space=vmem, size = 0x2000, scoped, tag = 'output window, operand 0, single buffered']
    %8 = vsyncpa [#allocation3], 0
    %9 = vsyncpa [#allocation6], 0
    %10 = vsyncpa [#allocation4], 0
    // Predicated region
    $region2: #{tpu_custom_call.1} parent=1 // pred_check
      _
    $region3: #{tpu_custom_call.1} parent=1 // pred_check_branch
      %12 = sbr.rel (0) target = $region5
    $region4: #{tpu_custom_call.1} parent=1 // pred_region
      %14 = vsyncadd [#allocation3], 0
      %s15 = sshll.u32 %s0, 4
      %s16 = int_to_ptr.hbm [resolvable:$true] %s15
      %s17 = sshll.u32 [#allocation2], 4
      %s18 = int_to_ptr.vmem [resolvable:$true] %s17
      %23 = dma.hbm_to_vmem [thread:$0]  %s16, 256, %s18, [#allocation3], 128, 128, 8
    $region5: #{tpu_custom_call.1} parent=1 // pred_fallthru
      _
    // Predicated region
    $region6: #{tpu_custom_call.1} parent=1 // pred_check
      _
    $region7: #{tpu_custom_call.1} parent=1 // pred_check_branch
      %25 = sbr.rel (0) target = $region9
    $region8: #{tpu_custom_call.1} parent=1 // pred_region
      %27 = vsyncadd [#allocation6], 0
      %s28 = sshll.u32 %s1, 4
      %s29 = int_to_ptr.hbm [resolvable:$true] %s28
      %s30 = sshll.u32 [#allocation5], 4
      %s31 = int_to_ptr.vmem [resolvable:$true] %s30
      %36 = dma.hbm_to_vmem [thread:$0]  %s29, 512, %s31, [#allocation6], 128, 128, 8
    $region9: #{tpu_custom_call.1} parent=1 // pred_fallthru
      _
    // Predicated region
    $region10: #{tpu_custom_call.1} parent=1 // pred_check
      _
    $region11: #{tpu_custom_call.1} parent=1 // pred_check_branch
      %38 = sbr.rel (0) target = $region13
    $region12: #{tpu_custom_call.1} parent=1 // pred_region
      _
    $region13: #{tpu_custom_call.1} parent=1 // pred_fallthru
      _
    // Predicated region
    $region14: #{tpu_custom_call.1} parent=1 // pred_check
      _
    $region15: #{tpu_custom_call.1} parent=1 // pred_check_branch
      %40 = sbr.rel (0) target = $region17
    $region16: #{tpu_custom_call.1} parent=1 // pred_region
      %42 = dma.done [#allocation3], 256
    $region17: #{tpu_custom_call.1} parent=1 // pred_fallthru
      _
    // Predicated region
    $region18: #{tpu_custom_call.1} parent=1 // pred_check
      _
    $region19: #{tpu_custom_call.1} parent=1 // pred_check_branch
      %44 = sbr.rel (0) target = $region21
    $region20: #{tpu_custom_call.1} parent=1 // pred_region
      %46 = dma.done [#allocation6], 512
    $region21: #{tpu_custom_call.1} parent=1 // pred_fallthru
      _
    %v47 = vld [vmem:[#allocation2] sm:$0xff]
    %v48 = vld [vmem:[#allocation2 + $0x8] sm:$0xff]
    %v49 = vld [vmem:[#allocation5] sm:$0xff]
    %v50 = vld [vmem:[#allocation5 + $0x8] sm:$0xff]
    %v51 = vld [vmem:[#allocation5 + $0x10] sm:$0xff]
    %v52 = vld [vmem:[#allocation5 + $0x18] sm:$0xff]
    %v53 = vld [vmem:[%s2] sm:$0x1]
    %v55 = vperm.slane %v53, 0
    %vm57 = vcmask 261120
    %v59 = vsel %vm57, %v47, 0
    %v62 = vsel %vm57, %v48, 0
    %64 = vmatpush.msra.mxu0 0.0
    %65 = vmatpush.msra.mxu0 0.0
    %66 = vmatpush.msra.mxu0 0.0
    %67 = vmatpush.msra.mxu0 0.0
    %68 = vmatpush.msra.mxu0 0.0
    %69 = vmatpush.msra.mxu0 0.0
    %70 = vmatpush.msra.mxu0 0.0
    %71 = vmatpush.msra.mxu0 0.0
    %72 = vmatpush.msra.mxu0 0.0
    %73 = vmatpush.msra.mxu0 0.0
    %74 = vmatpush.msra.mxu0 0.0
    %75 = vmatpush.msra.mxu0 0.0
    %76 = vmatpush.msra.mxu0 %v52
    %77 = vmatpush.msra.mxu0 %v51
    %78 = vmatpush.msra.mxu0 %v50
    %79 = vmatpush.msra.mxu0 %v49
    %80 = vmatmul.f32.gmra.mxu0 %v59
    %v81 = vpop.f32.mrf.mxu0
    %v82 = vadd.f32 %v55, %v81
    %83 = vmatmul.f32.gmra.mxu0 %v62
    %v84 = vpop.f32.mrf.mxu0
    %v85 = vadd.f32 %v55, %v84
    %86 = vdwg.mxu0
    %87 = vst [vmem:[#allocation7] sm:$0xff] %v82
    %88 = vst [vmem:[#allocation7 + $0x8] sm:$0xff] %v85
    // Predicated region
    $region22: #{tpu_custom_call.1} parent=1 // pred_check
      _
    $region23: #{tpu_custom_call.1} parent=1 // pred_check_branch
      %90 = sbr.rel (0) target = $region25
    $region24: #{tpu_custom_call.1} parent=1 // pred_region
      %92 = vsyncadd [#allocation4], 0
      %s93 = sshll.u32 [#allocation7], 4
      %s94 = int_to_ptr.vmem [resolvable:$true] %s93
      %s95 = sshll.u32 %s3, 4
      %s96 = int_to_ptr.hbm [resolvable:$true] %s95
      %101 = dma.vmem_to_hbm [thread:$0]  %s94, 256, %s96, [#allocation4], 128, 128, 8
    $region25: #{tpu_custom_call.1} parent=1 // pred_fallthru
      _
    // Predicated region
    $region26: #{tpu_custom_call.1} parent=1 // pred_check
      _
    $region27: #{tpu_custom_call.1} parent=1 // pred_check_branch
      %103 = sbr.rel (0) target = $region29
    $region28: #{tpu_custom_call.1} parent=1 // pred_region
      %105 = dma.done [#allocation4], 256
    $region29: #{tpu_custom_call.1} parent=1 // pred_fallthru
      _
    %106 = vsyncpa [#allocation3], 1
    %107 = vsyncpa [#allocation6], 1
    %108 = vsyncpa [#allocation4], 1

</llo_original>
